<compile_context>
chip_gen: v7x
topology: tpu7x:2x2x1
jax: 0.10.0
libtpu: 0.0.40
codegen_flags: <defaults>
</compile_context>

<pallas_src>
import jax
import jax.numpy as jnp
from jax import lax
from jax.experimental import pallas as pl
from jax.experimental.pallas import tpu as pltpu


def _round_up(x, m):
    return (x + m - 1) // m * m


def _mlp_kernel(x_ref, w1_ref, b1_ref, w2_ref, b2_ref, o_ref):
    # x_ref : (Bt, 16)  input rows for this grid step (compute dtype)
    # w1_ref: (64, 16)  fc1 weight, PyTorch (out, in) layout
    # b1_ref: (64, 1)   fc1 bias (f32)
    # w2_ref: (1, 64)   fc2 weight, PyTorch (out, in) layout
    # b2_ref: (1,)      fc2 bias (f32 scalar in SMEM)
    # o_ref : (1, Bt)   lane-dense output block (batch on lanes)

    # h^T = W1 @ x^T -> (64, Bt): contract the in_features (=16) dims (A @ B^T form).
    h_t = lax.dot_general(
        w1_ref[...], x_ref[...],
        dimension_numbers=(((1,), (1,)), ((), ())),
        preferred_element_type=jnp.float32,
    )
    # Bias + ReLU on the f32 accumulator (safe on v5e's no-bf16 VPU).
    h_t = jnp.maximum(h_t + b1_ref[...], 0.0)

    # y^T = W2 @ h^T -> (1, Bt): wide MXU op (N = Bt), not a 1-column matmul.
    y_t = jnp.dot(
        w2_ref[...], h_t.astype(w2_ref.dtype),
        preferred_element_type=jnp.float32,
    )
    o_ref[...] = (y_t + b2_ref[0]).astype(o_ref.dtype)


def simple_nn_forward(x, w1, b1, w2, b2, *, block_rows=4096):
    """Forward pass of SimpleNN.

    x : (B, 16)               input (f32 or bf16)
    w1: (64, 16), b1: (64,)   fc1 params in PyTorch (out_features, in_features) layout
    w2: (1, 64),  b2: (1,)    fc2 params in PyTorch layout
    returns (B, 1), dtype = x.dtype
    """
    B, F = x.shape
    assert F == 16 and w1.shape == (64, 16) and w2.shape == (1, 64)
    dtype = x.dtype

    # Batch tile: multiple of 256 (MXU-N multiple for v6e/v7x, 128-aligned for v5e),
    # capped at block_rows to keep the per-step working set small vs. v7x's VMEM.
    bt = min(_round_up(block_rows, 256), _round_up(max(B, 1), 256))
    b_pad = _round_up(B, bt)
    if b_pad != B:
        x = jnp.pad(x, ((0, b_pad - B), (0, 0)))

    w1 = w1.astype(dtype)
    w2 = w2.astype(dtype)
    b1_col = b1.reshape(64, 1).astype(jnp.float32)
    b2_s = b2.reshape(1).astype(jnp.float32)

    grid = (b_pad // bt,)
    out = pl.pallas_call(
        _mlp_kernel,
        out_shape=jax.ShapeDtypeStruct((1, b_pad), dtype),
        grid=grid,
        in_specs=[
            pl.BlockSpec((bt, 16), lambda i: (i, 0)),            # x: advances along B
            pl.BlockSpec((64, 16), lambda i: (0, 0)),            # w1: VMEM-resident
            pl.BlockSpec((64, 1), lambda i: (0, 0)),             # b1: VMEM-resident
            pl.BlockSpec((1, 64), lambda i: (0, 0)),             # w2: VMEM-resident
            pl.BlockSpec(memory_space=pltpu.MemorySpace.SMEM),   # b2: SMEM scalar
        ],
        out_specs=pl.BlockSpec((1, bt), lambda i: (0, i)),        # lane-dense output
        compiler_params=pltpu.CompilerParams(
            dimension_semantics=("parallel",),                    # v7x: 2 TCs share B
            vmem_limit_bytes=32 * 1024 * 1024,
        ),
    )(x, w1, b1_col, w2, b2_s)

    return out[0, :B].reshape(B, 1)


def init_params(key):
    """PyTorch nn.Linear default init: U(-1/sqrt(fan_in), 1/sqrt(fan_in)), (out,in) layout."""
    k1, k2, k3, k4 = jax.random.split(key, 4)
    bound1 = 1.0 / jnp.sqrt(16.0)
    bound2 = 1.0 / jnp.sqrt(64.0)
    w1 = jax.random.uniform(k1, (64, 16), jnp.float32, -bound1, bound1)
    b1 = jax.random.uniform(k2, (64,), jnp.float32, -bound1, bound1)
    w2 = jax.random.uniform(k3, (1, 64), jnp.float32, -bound2, bound2)
    b2 = jax.random.uniform(k4, (1,), jnp.float32, -bound2, bound2)
    return w1, b1, w2, b2


def _reference(x, w1, b1, w2, b2):
    h = jnp.maximum(x.astype(jnp.float32) @ w1.astype(jnp.float32).T + b1, 0.0)
    return h @ w2.astype(jnp.float32).T + b2


if __name__ == "__main__":
    key = jax.random.PRNGKey(0)
    kx, kp = jax.random.split(key)

    # Small but non-trivial batch: exercises a multi-step grid and a padded last
    # tile (600 is not a multiple of the 256-row tile used here).
    B = 600
    x = jax.random.normal(kx, (B, 16), jnp.float32)
    w1, b1, w2, b2 = init_params(kp)
    ref = _reference(x, w1, b1, w2, b2)

    # f32 path: tight tolerance vs. plain-JAX reference.
    out = simple_nn_forward(x, w1, b1, w2, b2, block_rows=256)
    out = jax.block_until_ready(out)
    assert out.shape == (B, 1)
    assert jnp.allclose(out, ref, atol=1e-5, rtol=1e-5)

    # bf16 path (halves HBM traffic on the mem-bound side; f32 accumulation).
    out_bf = simple_nn_forward(
        x.astype(jnp.bfloat16),
        w1.astype(jnp.bfloat16), b1,
        w2.astype(jnp.bfloat16), b2,
        block_rows=256,
    )
    out_bf = jax.block_until_ready(out_bf)
    assert out_bf.shape == (B, 1)
    assert jnp.allclose(out_bf.astype(jnp.float32), ref, atol=1e-1, rtol=1e-1)

    print("KERNEL_OK")
</pallas_src>

<mosaic_0001>
module attributes {stable_mosaic.version = 11 : i64} {
  func.func @_mlp_kernel(%arg0: i32, %arg1: memref<256x16xf32, #tpu.memory_space<vmem>>, %arg2: memref<64x16xf32, #tpu.memory_space<vmem>>, %arg3: memref<64x1xf32, #tpu.memory_space<vmem>>, %arg4: memref<1x64xf32, #tpu.memory_space<vmem>>, %arg5: memref<1xf32, #tpu.memory_space<smem>>, %arg6: memref<1x256xf32, #tpu.memory_space<vmem>>) attributes {dimension_semantics = [#tpu.dimension_semantics<parallel>], iteration_bounds = array<i64: 3>, scalar_prefetch = 0 : i64, scratch_operands = 0 : i64, tpu.core_type = #tpu.core_type<tc>, window_params = [{transform_indices = @transform_0, window_bounds = array<i64: 256, 16>}, {pipeline_mode = #tpu.pipeline_mode<synchronous>, transform_indices = @transform_1, window_bounds = array<i64: 64, 16>}, {pipeline_mode = #tpu.pipeline_mode<synchronous>, transform_indices = @transform_2, window_bounds = array<i64: 64, 1>}, {pipeline_mode = #tpu.pipeline_mode<synchronous>, transform_indices = @transform_3, window_bounds = array<i64: 1, 64>}, {transform_indices = @transform_4, window_bounds = array<i64: 1>}, {transform_indices = @transform_5, window_bounds = array<i64: 1, 256>}]} {
    %c0 = arith.constant 0 : index
    %c0_0 = arith.constant 0 : index
    %0 = vector.load %arg2[%c0, %c0_0] : memref<64x16xf32, #tpu.memory_space<vmem>>, vector<64x16xf32>
    %c0_1 = arith.constant 0 : index
    %c0_2 = arith.constant 0 : index
    %1 = vector.load %arg1[%c0_1, %c0_2] : memref<256x16xf32, #tpu.memory_space<vmem>>, vector<256x16xf32>
    %cst = arith.constant dense<0.000000e+00> : vector<64x256xf32>
    %2 = tpu.matmul %0, %1, %cst {dimension_numbers = #tpu.dot_dimension_numbers<[1], [1], [0], [0], [0, 0, 1, 0], [], []>} : vector<64x16xf32>, vector<256x16xf32>, vector<64x256xf32> -> vector<64x256xf32>
    %c0_3 = arith.constant 0 : index
    %c0_4 = arith.constant 0 : index
    %3 = vector.load %arg3[%c0_3, %c0_4] : memref<64x1xf32, #tpu.memory_space<vmem>>, vector<64x1xf32>
    %4 = vector.broadcast %3 : vector<64x1xf32> to vector<64x256xf32>
    %5 = arith.addf %2, %4 : vector<64x256xf32>
    %cst_5 = arith.constant 0.000000e+00 : f32
    %6 = vector.broadcast %cst_5 : f32 to vector<64x256xf32>
    %7 = arith.maximumf %5, %6 : vector<64x256xf32>
    %c0_6 = arith.constant 0 : index
    %c0_7 = arith.constant 0 : index
    %8 = vector.load %arg4[%c0_6, %c0_7] : memref<1x64xf32, #tpu.memory_space<vmem>>, vector<1x64xf32>
    %cst_8 = arith.constant dense<0.000000e+00> : vector<1x256xf32>
    %9 = tpu.matmul %8, %7, %cst_8 {dimension_numbers = #tpu.dot_dimension_numbers<[1], [0], [0], [1], [0, 0, 1, 1], [], []>} : vector<1x64xf32>, vector<64x256xf32>, vector<1x256xf32> -> vector<1x256xf32>
    %c0_9 = arith.constant 0 : index
    %10 = memref.load %arg5[%c0_9] : memref<1xf32, #tpu.memory_space<smem>>
    %11 = vector.broadcast %10 : f32 to vector<1x256xf32>
    %12 = arith.addf %9, %11 : vector<1x256xf32>
    %c0_10 = arith.constant 0 : index
    %c0_11 = arith.constant 0 : index
    %13 = vector.load %arg6[%c0_10, %c0_11] : memref<1x256xf32, #tpu.memory_space<vmem>>, vector<1x256xf32>
    tpu.vector_store %arg6[%c0_10, %c0_11], %12 {strides = array<i32>} : memref<1x256xf32, #tpu.memory_space<vmem>>, vector<1x256xf32>,
    return
  }
  func.func @transform_0(%arg0: i32) -> (i32, i32) {
    %c0_i32 = arith.constant 0 : i32
    %c0_i32_0 = arith.constant 0 : i32
    return %arg0, %c0_i32 : i32, i32
  }
  func.func @transform_1(%arg0: i32) -> (i32, i32) {
    %c0_i32 = arith.constant 0 : i32
    %c0_i32_0 = arith.constant 0 : i32
    %c0_i32_1 = arith.constant 0 : i32
    return %c0_i32, %c0_i32_0 : i32, i32
  }
  func.func @transform_2(%arg0: i32) -> (i32, i32) {
    %c0_i32 = arith.constant 0 : i32
    %c0_i32_0 = arith.constant 0 : i32
    %c0_i32_1 = arith.constant 0 : i32
    return %c0_i32, %c0_i32_0 : i32, i32
  }
  func.func @transform_3(%arg0: i32) -> (i32, i32) {
    %c0_i32 = arith.constant 0 : i32
    %c0_i32_0 = arith.constant 0 : i32
    %c0_i32_1 = arith.constant 0 : i32
    return %c0_i32, %c0_i32_0 : i32, i32
  }
  func.func @transform_4(%arg0: i32) -> i32 {
    %c0_i32 = arith.constant 0 : i32
    %c0_i32_0 = arith.constant 0 : i32
    return %c0_i32 : i32
  }
  func.func @transform_5(%arg0: i32) -> (i32, i32) {
    %c0_i32 = arith.constant 0 : i32
    %c0_i32_0 = arith.constant 0 : i32
    return %c0_i32, %arg0 : i32, i32
  }
}

</mosaic_0001>

<llo_original>
// kernel: tpu_custom_call.1
$region0: #{tpu_custom_call.1}
  #allocation0 [shape = 'u32[]', space=smem, size = 0x4, offset = 0x4, fixed_abs, tag = 'smem constant byte address 0x4 - core index']
  #allocation1 [shape = 'u32[144,128]{1,0:T(1,128)}', space=vmem, size = 0x12000, scoped, tag = 'internal scratch']
  #allocation2 [shape = 'f32[1]{0:T(128)S(6)}', space=smem, size = 0x200, scoped, tag = 'scoped memory for tpu_custom_call.1']
  %s0 = inlined_call_operand.vmem [shape: f32[768,16], index: 0, kind: input, shape index: {}]
  %s1 = inlined_call_operand.vmem [shape: f32[64,16], index: 1, kind: input, shape index: {}]
  %s2 = inlined_call_operand.vmem [shape: f32[64,1], index: 2, kind: input, shape index: {}]
  %s3 = inlined_call_operand.vmem [shape: f32[1,64], index: 3, kind: input, shape index: {}]
  %s4 = inlined_call_operand.<no memory space> [shape: f32[1], index: 4, kind: input, shape index: {}]
  %s5 = inlined_call_operand.hbm [shape: f32[1,768], index: 5, kind: output, shape index: {}]
  %s6 = sld [smem:[#allocation0]]
  $region53: #{tpu_custom_call.1} parent=0
    _
  %s8 = ssub.s32 1, %s6
  %s9 = scalar_select 0, %s8, %s6
  %10 = sst [smem:[#allocation2]] %s4
  $region1: #{tpu_custom_call.1} parent=0
    #allocation3 [shape = 'u8[2048]{0}', space=vmem, size = 0x800, scoped, tag = 'output window, operand 0']
    #allocation4 [shape = 's32[2]{0}', space=sflag, size = 0x8, scoped, tag = 'scoped memory for tpu_custom_call.1']
    %11 = vsyncpa [#allocation4], 0
    %s12 = scalar_lea.sflag [#allocation4], 1
    %13 = vsyncpa %s12, 0
    loop: start=0, step=1, limit=5
    $region2: #{tpu_custom_call.1} parent=1 // loop_pre_header
      _
    $region3: #{tpu_custom_call.1} parent=1 // loop_header
      %s15 = sphi 0, %s19
      %p16 = scmp.ge.s32.totalorder %s15, 5
      %s25 = sphi 0, %s27
      %s28 = sphi 0, %s25
      %s29 = sphi 0, %s28
      %s45 = sphi 0, %s29
      %s49 = sphi 0, %s49
      %s51 = sphi 0, %s49
      %s52 = sphi 0, %s51
      %s66 = sphi 0, %s52
      %s70 = sphi 0, %s70
      %s72 = sphi 0, %s70
      %s73 = sphi 0, %s72
      %s87 = sphi 0, %s73
      %s91 = sphi 0, %s91
      %s93 = sphi 0, %s91
      %s94 = sphi 0, %s93
      %s108 = sphi 0, %s94
      %s112 = sphi 0, %s112
      %s114 = sphi 0, %s112
      %s115 = sphi 0, %s114
      %s129 = sphi 0, %s115
      %s135 = sphi 0, %s137
      %s138 = sphi 0, %s135
      %s139 = sphi 0, %s138
      %s155 = sphi 0, %s139
    $region4: #{tpu_custom_call.1} parent=1 // loop_header_branch
      %18 = sbr.rel (%p16) target = $region8
    $region5: #{tpu_custom_call.1} parent=1 // loop_body
      %s20 = ssub.s32 %s15, 1
      %s21 = ssub.s32 %s15, 2
      %s22 = sadd.s32 %s15, 1
      %s23 = ssub.s32 %s15, %s22
      %p24 = scmp.eq.s32.totalorder %s23, 0
      %s26 = sadd.s32 %s25, 1
      %s27 = scalar_select %p24, %s25, %s26
      %p30 = pneg %p24
      %p31 = scmp.eq.s32.totalorder %s15, 2
      %p32 = por %p30, %p31
      %p33 = scmp.ne.s32.totalorder %s25, %s28
      %p34 = scmp.eq.s32.totalorder %s15, 0
      %p35 = por %p33, %p34
      %p36 = scmp.ne.s32.totalorder %s25, %s28
      %p37 = scmp.eq.s32.totalorder %s20, 2
      %p38 = por %p36, %p37
      %p39 = scmp.ne.s32.totalorder %s28, %s29
      %p40 = scmp.eq.s32.totalorder %s20, 0
      %p41 = por %p39, %p40
      %p42 = scmp.ne.s32.totalorder %s28, %s29
      %p43 = scmp.eq.s32.totalorder %s21, 2
      %p44 = por %p42, %p43
      %p46 = scmp.ne.s32.totalorder %s29, %s45
      %p47 = scmp.eq.s32.totalorder %s21, 0
      %p48 = por %p46, %p47
      %s50 = sadd.s32 %s49, 1
      %p53 = scmp.eq.s32.totalorder %s15, 2
      %p54 = scmp.ne.s32.totalorder %s49, %s51
      %p55 = scmp.eq.s32.totalorder %s15, 0
      %p56 = por %p54, %p55
      %p57 = scmp.ne.s32.totalorder %s49, %s51
      %p58 = scmp.eq.s32.totalorder %s20, 2
      %p59 = por %p57, %p58
      %p60 = scmp.ne.s32.totalorder %s51, %s52
      %p61 = scmp.eq.s32.totalorder %s20, 0
      %p62 = por %p60, %p61
      %p63 = scmp.ne.s32.totalorder %s51, %s52
      %p64 = scmp.eq.s32.totalorder %s21, 2
      %p65 = por %p63, %p64
      %p67 = scmp.ne.s32.totalorder %s52, %s66
      %p68 = scmp.eq.s32.totalorder %s21, 0
      %p69 = por %p67, %p68
      %s71 = sadd.s32 %s70, 1
      %p74 = scmp.eq.s32.totalorder %s15, 2
      %p75 = scmp.ne.s32.totalorder %s70, %s72
      %p76 = scmp.eq.s32.totalorder %s15, 0
      %p77 = por %p75, %p76
      %p78 = scmp.ne.s32.totalorder %s70, %s72
      %p79 = scmp.eq.s32.totalorder %s20, 2
      %p80 = por %p78, %p79
      %p81 = scmp.ne.s32.totalorder %s72, %s73
      %p82 = scmp.eq.s32.totalorder %s20, 0
      %p83 = por %p81, %p82
      %p84 = scmp.ne.s32.totalorder %s72, %s73
      %p85 = scmp.eq.s32.totalorder %s21, 2
      %p86 = por %p84, %p85
      %p88 = scmp.ne.s32.totalorder %s73, %s87
      %p89 = scmp.eq.s32.totalorder %s21, 0
      %p90 = por %p88, %p89
      %s92 = sadd.s32 %s91, 1
      %p95 = scmp.eq.s32.totalorder %s15, 2
      %p96 = scmp.ne.s32.totalorder %s91, %s93
      %p97 = scmp.eq.s32.totalorder %s15, 0
      %p98 = por %p96, %p97
      %p99 = scmp.ne.s32.totalorder %s91, %s93
      %p100 = scmp.eq.s32.totalorder %s20, 2
      %p101 = por %p99, %p100
      %p102 = scmp.ne.s32.totalorder %s93, %s94
      %p103 = scmp.eq.s32.totalorder %s20, 0
      %p104 = por %p102, %p103
      %p105 = scmp.ne.s32.totalorder %s93, %s94
      %p106 = scmp.eq.s32.totalorder %s21, 2
      %p107 = por %p105, %p106
      %p109 = scmp.ne.s32.totalorder %s94, %s108
      %p110 = scmp.eq.s32.totalorder %s21, 0
      %p111 = por %p109, %p110
      %s113 = sadd.s32 %s112, 1
      %p116 = scmp.eq.s32.totalorder %s15, 2
      %p117 = scmp.ne.s32.totalorder %s112, %s114
      %p118 = scmp.eq.s32.totalorder %s15, 0
      %p119 = por %p117, %p118
      %p120 = scmp.ne.s32.totalorder %s112, %s114
      %p121 = scmp.eq.s32.totalorder %s20, 2
      %p122 = por %p120, %p121
      %p123 = scmp.ne.s32.totalorder %s114, %s115
      %p124 = scmp.eq.s32.totalorder %s20, 0
      %p125 = por %p123, %p124
      %p126 = scmp.ne.s32.totalorder %s114, %s115
      %p127 = scmp.eq.s32.totalorder %s21, 2
      %p128 = por %p126, %p127
      %p130 = scmp.ne.s32.totalorder %s115, %s129
      %p131 = scmp.eq.s32.totalorder %s21, 0
      %p132 = por %p130, %p131
      %s133 = ssub.s32 %s15, %s22
      %p134 = scmp.eq.s32.totalorder %s133, 0
      %s136 = sadd.s32 %s135, 1
      %s137 = scalar_select %p134, %s135, %s136
      %p140 = pneg %p134
      %p141 = scmp.eq.s32.totalorder %s15, 2
      %p142 = por %p140, %p141
      %p143 = scmp.ne.s32.totalorder %s135, %s138
      %p144 = scmp.eq.s32.totalorder %s15, 0
      %p145 = por %p143, %p144
      %p146 = scmp.ne.s32.totalorder %s135, %s138
      %p147 = scmp.eq.s32.totalorder %s20, 2
      %p148 = por %p146, %p147
      %p149 = scmp.ne.s32.totalorder %s138, %s139
      %p150 = scmp.eq.s32.totalorder %s20, 0
      %p151 = por %p149, %p150
      %p152 = scmp.ne.s32.totalorder %s138, %s139
      %p153 = scmp.eq.s32.totalorder %s21, 2
      %p154 = por %p152, %p153
      %p156 = scmp.ne.s32.totalorder %s139, %s155
      %p157 = scmp.eq.s32.totalorder %s21, 0
      %p158 = por %p156, %p157
      %p159 = scmp.le.s32.totalorder 1, %s15
      %p160 = scmp.lt.s32.totalorder %s15, 4
      %p161 = pnand %p159, %p160
      %p162 = pneg %p161
      // Predicated region
      $region9: #{tpu_custom_call.1} parent=5 // pred_check
        _
      $region10: #{tpu_custom_call.1} parent=5 // pred_check_branch
        %164 = sbr.rel (%p161) target = $region12
      $region11: #{tpu_custom_call.1} parent=5 // pred_region
        %s165 = ssub.s32 %s15, 1
        // Predicated region
        $region13: #{tpu_custom_call.1} parent=11 // pred_check
          %p166 = pneg %p62
        $region14: #{tpu_custom_call.1} parent=11 // pred_check_branch
          %168 = sbr.rel (%p166) target = $region16
        $region15: #{tpu_custom_call.1} parent=11 // pred_region
          _
        $region16: #{tpu_custom_call.1} parent=11 // pred_fallthru
          _
        // Predicated region
        $region17: #{tpu_custom_call.1} parent=11 // pred_check
          %p169 = pneg %p83
        $region18: #{tpu_custom_call.1} parent=11 // pred_check_branch
          %171 = sbr.rel (%p169) target = $region20
        $region19: #{tpu_custom_call.1} parent=11 // pred_region
          _
        $region20: #{tpu_custom_call.1} parent=11 // pred_fallthru
          _
        // Predicated region
        $region21: #{tpu_custom_call.1} parent=11 // pred_check
          %p172 = pneg %p104
        $region22: #{tpu_custom_call.1} parent=11 // pred_check_branch
          %174 = sbr.rel (%p172) target = $region24
        $region23: #{tpu_custom_call.1} parent=11 // pred_region
          _
        $region24: #{tpu_custom_call.1} parent=11 // pred_fallthru
          _
        // Predicated region
        $region25: #{tpu_custom_call.1} parent=11 // pred_check
          %p175 = pneg %p125
        $region26: #{tpu_custom_call.1} parent=11 // pred_check_branch
          %177 = sbr.rel (%p175) target = $region28
        $region27: #{tpu_custom_call.1} parent=11 // pred_region
          _
        $region28: #{tpu_custom_call.1} parent=11 // pred_fallthru
          _
      $region12: #{tpu_custom_call.1} parent=5 // pred_fallthru
        _
      %p178 = scmp.lt.s32.totalorder %s15, 3
      // Predicated region
      $region29: #{tpu_custom_call.1} parent=5 // pred_check
        %p179 = pneg %p178
      $region30: #{tpu_custom_call.1} parent=5 // pred_check_branch
        %181 = sbr.rel (%p179) target = $region32
      $region31: #{tpu_custom_call.1} parent=5 // pred_region
        // Predicated region
        $region33: #{tpu_custom_call.1} parent=31 // pred_check
          %p182 = pneg %p35
        $region34: #{tpu_custom_call.1} parent=31 // pred_check_branch
          %184 = sbr.rel (%p182) target = $region36
        $region35: #{tpu_custom_call.1} parent=31 // pred_region
          %s185 = smul.u32 32, %s15
          %p186 = scmp.lt.s32.totalorder %s185, 95
          %s187 = scalar_select %p186, %s185, 95
          %s188 = smul.addr %s187, 8
          %s189 = scalar_lea.vmem %s0, %s188
          %s190 = smul.u32 32, %s15
        $region36: #{tpu_custom_call.1} parent=31 // pred_fallthru
          _
      $region32: #{tpu_custom_call.1} parent=5 // pred_fallthru
        _
      %p191 = scmp.le.s32.totalorder 1, %s15
      %p192 = scmp.lt.s32.totalorder %s15, 4
      %p193 = pnand %p191, %p192
      %p194 = pneg %p193
      // Predicated region
      $region37: #{tpu_custom_call.1} parent=5 // pred_check
        _
      $region38: #{tpu_custom_call.1} parent=5 // pred_check_branch
        %196 = sbr.rel (%p193) target = $region40
      $region39: #{tpu_custom_call.1} parent=5 // pred_region
        %s197 = ssub.s32 %s15, 1
        %s198 = smul.u32 32, %s20
        %p199 = scmp.lt.s32.totalorder %s198, 95
        %s200 = scalar_select %p199, %s198, 95
        %s201 = smul.addr %s200, 8
        %s202 = scalar_lea.vmem %s0, %s201
        %p203 = pneg %p41
        %p204 = pneg %p38
        %p205 = pneg %p62
        %p206 = pneg %p59
        %p207 = pneg %p83
        %p208 = pneg %p80
        %p209 = pneg %p104
        %p210 = pneg %p101
        %p211 = pneg %p125
        %p212 = pneg %p122
        %p213 = pneg %p151
        %p214 = pneg %p148
        %s215 = sand.u32 %s138, 1
        %s216 = scalar_lea.sflag [#allocation4], %s215
        %s217 = sand.u32 %s138, 1
        %s218 = smul.addr %s217, 2
        %s219 = scalar_lea.vmem [#allocation3], %s218
        %s220 = smul.u32 32, %s20
        %p221 = scmp.lt.s32.totalorder %s220, 95
        %s222 = scalar_select %p221, %s220, 95
        %s223 = smul.addr %s222, 8
        %s224 = scalar_lea.vmem %s0, %s223
        %s225 = smul.u32 32, %s20
        %s226 = smul.u32 2, %s20
        %v227 = vld [vmem:[%s1] sm:$0xff]
        %v228 = vld [vmem:[%s1 + $0x8] sm:$0xff]
        %v229 = vld [vmem:[%s1 + $0x10] sm:$0xff]
        %v230 = vld [vmem:[%s1 + $0x18] sm:$0xff]
        %v231 = vld [vmem:[%s1 + $0x20] sm:$0xff]
        %v232 = vld [vmem:[%s1 + $0x28] sm:$0xff]
        %v233 = vld [vmem:[%s1 + $0x30] sm:$0xff]
        %v234 = vld [vmem:[%s1 + $0x38] sm:$0xff]
        %v235 = vld [vmem:[%s224] sm:$0xff]
        %v236 = vld [vmem:[%s224 + $0x8] sm:$0xff]
        %v237 = vld [vmem:[%s224 + $0x10] sm:$0xff]
        %v238 = vld [vmem:[%s224 + $0x18] sm:$0xff]
        %v239 = vld [vmem:[%s224 + $0x20] sm:$0xff]
        %v240 = vld [vmem:[%s224 + $0x28] sm:$0xff]
        %v241 = vld [vmem:[%s224 + $0x30] sm:$0xff]
        %v242 = vld [vmem:[%s224 + $0x38] sm:$0xff]
        %v243 = vld [vmem:[%s224 + $0x40] sm:$0xff]
        %v244 = vld [vmem:[%s224 + $0x48] sm:$0xff]
        %v245 = vld [vmem:[%s224 + $0x50] sm:$0xff]
        %v246 = vld [vmem:[%s224 + $0x58] sm:$0xff]
        %v247 = vld [vmem:[%s224 + $0x60] sm:$0xff]
        %v248 = vld [vmem:[%s224 + $0x68] sm:$0xff]
        %v249 = vld [vmem:[%s224 + $0x70] sm:$0xff]
        %v250 = vld [vmem:[%s224 + $0x78] sm:$0xff]
        %v251 = vld [vmem:[%s224 + $0x80] sm:$0xff]
        %v252 = vld [vmem:[%s224 + $0x88] sm:$0xff]
        %v253 = vld [vmem:[%s224 + $0x90] sm:$0xff]
        %v254 = vld [vmem:[%s224 + $0x98] sm:$0xff]
        %v255 = vld [vmem:[%s224 + $0xa0] sm:$0xff]
        %v256 = vld [vmem:[%s224 + $0xa8] sm:$0xff]
        %v257 = vld [vmem:[%s224 + $0xb0] sm:$0xff]
        %v258 = vld [vmem:[%s224 + $0xb8] sm:$0xff]
        %v259 = vld [vmem:[%s224 + $0xc0] sm:$0xff]
        %v260 = vld [vmem:[%s224 + $0xc8] sm:$0xff]
        %v261 = vld [vmem:[%s224 + $0xd0] sm:$0xff]
        %v262 = vld [vmem:[%s224 + $0xd8] sm:$0xff]
        %v263 = vld [vmem:[%s224 + $0xe0] sm:$0xff]
        %v264 = vld [vmem:[%s224 + $0xe8] sm:$0xff]
        %v265 = vld [vmem:[%s224 + $0xf0] sm:$0xff]
        %v266 = vld [vmem:[%s224 + $0xf8] sm:$0xff]
        %v267 = vld [vmem:[%s2] sm:$0xff]
        %v268 = vld [vmem:[%s2 + $0x8] sm:$0xff]
        %v269 = vld [vmem:[%s2 + $0x10] sm:$0xff]
        %v270 = vld [vmem:[%s2 + $0x18] sm:$0xff]
        %v271 = vld [vmem:[%s2 + $0x20] sm:$0xff]
        %v272 = vld [vmem:[%s2 + $0x28] sm:$0xff]
        %v273 = vld [vmem:[%s2 + $0x30] sm:$0xff]
        %v274 = vld [vmem:[%s2 + $0x38] sm:$0xff]
        %276 = vset.pattern.permute.xlu0 0
        %277 = vperm.xlu0 %276, %v267
        %v278 = vpop.permute.xlu0 %277
        %281 = vset.pattern.permute.xlu0 0
        %282 = vperm.xlu0 %281, %v268
        %v283 = vpop.permute.xlu0 %282
        %286 = vset.pattern.permute.xlu0 0
        %287 = vperm.xlu0 %286, %v269
        %v288 = vpop.permute.xlu0 %287
        %291 = vset.pattern.permute.xlu0 0
        %292 = vperm.xlu0 %291, %v270
        %v293 = vpop.permute.xlu0 %292
        %296 = vset.pattern.permute.xlu0 0
        %297 = vperm.xlu0 %296, %v271
        %v298 = vpop.permute.xlu0 %297
        %301 = vset.pattern.permute.xlu0 0
        %302 = vperm.xlu0 %301, %v272
        %v303 = vpop.permute.xlu0 %302
        %306 = vset.pattern.permute.xlu0 0
        %307 = vperm.xlu0 %306, %v273
        %v308 = vpop.permute.xlu0 %307
        %311 = vset.pattern.permute.xlu0 0
        %312 = vperm.xlu0 %311, %v274
        %v313 = vpop.permute.xlu0 %312
        %vm315 = vcmask 130048
        %v317 = vsel %vm315, %v227, 0
        %v320 = vsel %vm315, %v228, 0
        %v323 = vsel %vm315, %v229, 0
        %v326 = vsel %vm315, %v230, 0
        %v329 = vsel %vm315, %v231, 0
        %v332 = vsel %vm315, %v232, 0
        %v335 = vsel %vm315, %v233, 0
        %v338 = vsel %vm315, %v234, 0
        %v341 = vsel %vm315, %v235, 0
        %v344 = vsel %vm315, %v236, 0
        %v347 = vsel %vm315, %v237, 0
        %v350 = vsel %vm315, %v238, 0
        %v353 = vsel %vm315, %v239, 0
        %v356 = vsel %vm315, %v240, 0
        %v359 = vsel %vm315, %v241, 0
        %v362 = vsel %vm315, %v242, 0
        %v365 = vsel %vm315, %v243, 0
        %v368 = vsel %vm315, %v244, 0
        %v371 = vsel %vm315, %v245, 0
        %v374 = vsel %vm315, %v246, 0
        %v377 = vsel %vm315, %v247, 0
        %v380 = vsel %vm315, %v248, 0
        %v383 = vsel %vm315, %v249, 0
        %v386 = vsel %vm315, %v250, 0
        %v389 = vsel %vm315, %v251, 0
        %v392 = vsel %vm315, %v252, 0
        %v395 = vsel %vm315, %v253, 0
        %v398 = vsel %vm315, %v254, 0
        %v401 = vsel %vm315, %v255, 0
        %v404 = vsel %vm315, %v256, 0
        %v407 = vsel %vm315, %v257, 0
        %v410 = vsel %vm315, %v258, 0
        %v413 = vsel %vm315, %v259, 0
        %v416 = vsel %vm315, %v260, 0
        %v419 = vsel %vm315, %v261, 0
        %v422 = vsel %vm315, %v262, 0
        %v425 = vsel %vm315, %v263, 0
        %v428 = vsel %vm315, %v264, 0
        %v431 = vsel %vm315, %v265, 0
        %v434 = vsel %vm315, %v266, 0
        %436 = vmatprep.subr.mxu0 0.0
        %437 = vmatpush1.xpose.msra.mxu0 %v341
        %438 = vmatprep.subr.mxu0 0.0
        %439 = vmatpush1.xpose.msra.mxu0 %v344
        %440 = vmatprep.subr.mxu0 0.0
        %441 = vmatpush1.xpose.msra.mxu0 %v347
        %442 = vmatprep.subr.mxu0 0.0
        %443 = vmatpush1.xpose.msra.mxu0 %v350
        %444 = vmatprep.subr.mxu0 0.0
        %445 = vmatpush1.xpose.msra.mxu0 %v353
        %446 = vmatprep.subr.mxu0 0.0
        %447 = vmatpush1.xpose.msra.mxu0 %v356
        %448 = vmatprep.subr.mxu0 0.0
        %449 = vmatpush1.xpose.msra.mxu0 %v359
        %450 = vmatprep.subr.mxu0 0.0
        %451 = vmatpush1.xpose.msra.mxu0 %v362
        %452 = vmatprep.subr.mxu0 0.0
        %453 = vmatpush1.xpose.msra.mxu0 %v365
        %454 = vmatprep.subr.mxu0 0.0
        %455 = vmatpush1.xpose.msra.mxu0 %v368
        %456 = vmatprep.subr.mxu0 0.0
        %457 = vmatpush1.xpose.msra.mxu0 %v371
        %458 = vmatprep.subr.mxu0 0.0
        %459 = vmatpush1.xpose.msra.mxu0 %v374
        %460 = vmatprep.subr.mxu0 0.0
        %461 = vmatpush1.xpose.msra.mxu0 %v377
        %462 = vmatprep.subr.mxu0 0.0
        %463 = vmatpush1.xpose.msra.mxu0 %v380
        %464 = vmatprep.subr.mxu0 0.0
        %465 = vmatpush1.xpose.msra.mxu0 %v383
        %466 = vmatprep.subr.mxu0 0.0
        %467 = vmatpush1.xpose.msra.mxu0 %v386
        %468 = vmatprep.subr.mxu0 0.0
        %469 = vmatpush1.xpose.msra.mxu0 %v389
        %470 = vmatprep.subr.mxu0 0.0
        %471 = vmatpush1.xpose.msra.mxu0 %v392
        %472 = vmatprep.subr.mxu0 0.0
        %473 = vmatpush1.xpose.msra.mxu0 %v395
        %474 = vmatprep.subr.mxu0 0.0
        %475 = vmatpush1.xpose.msra.mxu0 %v398
        %476 = vmatprep.subr.mxu0 0.0
        %477 = vmatpush1.xpose.msra.mxu0 %v401
        %478 = vmatprep.subr.mxu0 0.0
        %479 = vmatpush1.xpose.msra.mxu0 %v404
        %480 = vmatprep.subr.mxu0 0.0
        %481 = vmatpush1.xpose.msra.mxu0 %v407
        %482 = vmatprep.subr.mxu0 0.0
        %483 = vmatpush1.xpose.msra.mxu0 %v410
        %484 = vmatprep.subr.mxu0 0.0
        %485 = vmatpush1.xpose.msra.mxu0 %v413
        %486 = vmatprep.subr.mxu0 0.0
        %487 = vmatpush1.xpose.msra.mxu0 %v416
        %488 = vmatprep.subr.mxu0 0.0
        %489 = vmatpush1.xpose.msra.mxu0 %v419
        %490 = vmatprep.subr.mxu0 0.0
        %491 = vmatpush1.xpose.msra.mxu0 %v422
        %492 = vmatprep.subr.mxu0 0.0
        %493 = vmatpush1.xpose.msra.mxu0 %v425
        %494 = vmatprep.subr.mxu0 0.0
        %495 = vmatpush1.xpose.msra.mxu0 %v428
        %496 = vmatprep.subr.mxu0 0.0
        %497 = vmatpush1.xpose.msra.mxu0 %v431
        %498 = vmatprep.subr.mxu0 0.0
        %499 = vmatpush1.xpose.msra.mxu0 %v434
        %500 = vmatprep.mubr.f32.mxu0 0.0
        %501 = vmatmul.mubr.f32.gmra.mrb[0].mxu0 %v317
        %v502 = vpop.f32.mrb[0].mxu0
        %v503 = vadd.f32 %v278, %v502
        %v504 = vpop.f32.mrb[0].mxu0
        %v505 = vadd.f32 %v278, %v504
        %506 = vmatprep.mubr.f32.mxu0 0.0
        %507 = vmatmul.mubr.f32.gmra.mrb[0].mxu0 %v320
        %v508 = vpop.f32.mrb[0].mxu0
        %v509 = vadd.f32 %v283, %v508
        %v510 = vpop.f32.mrb[0].mxu0
        %v511 = vadd.f32 %v283, %v510
        %512 = vmatprep.mubr.f32.mxu0 0.0
        %513 = vmatmul.mubr.f32.gmra.mrb[0].mxu0 %v323
        %v514 = vpop.f32.mrb[0].mxu0
        %v515 = vadd.f32 %v288, %v514
        %v516 = vpop.f32.mrb[0].mxu0
        %v517 = vadd.f32 %v288, %v516
        %518 = vmatprep.mubr.f32.mxu0 0.0
        %519 = vmatmul.mubr.f32.gmra.mrb[0].mxu0 %v326
        %v520 = vpop.f32.mrb[0].mxu0
        %v521 = vadd.f32 %v293, %v520
        %v522 = vpop.f32.mrb[0].mxu0
        %v523 = vadd.f32 %v293, %v522
        %524 = vmatprep.mubr.f32.mxu0 0.0
        %525 = vmatmul.mubr.f32.gmra.mrb[0].mxu0 %v329
        %v526 = vpop.f32.mrb[0].mxu0
        %v527 = vadd.f32 %v298, %v526
        %v528 = vpop.f32.mrb[0].mxu0
        %v529 = vadd.f32 %v298, %v528
        %530 = vmatprep.mubr.f32.mxu0 0.0
        %531 = vmatmul.mubr.f32.gmra.mrb[0].mxu0 %v332
        %v532 = vpop.f32.mrb[0].mxu0
        %v533 = vadd.f32 %v303, %v532
        %v534 = vpop.f32.mrb[0].mxu0
        %v535 = vadd.f32 %v303, %v534
        %536 = vmatprep.mubr.f32.mxu0 0.0
        %537 = vmatmul.mubr.f32.gmra.mrb[0].mxu0 %v335
        %v538 = vpop.f32.mrb[0].mxu0
        %v539 = vadd.f32 %v308, %v538
        %v540 = vpop.f32.mrb[0].mxu0
        %v541 = vadd.f32 %v308, %v540
        %542 = vmatprep.mubr.f32.mxu0 0.0
        %543 = vmatmul.mubr.f32.gmra.mrb[0].mxu0 %v338
        %v544 = vpop.f32.mrb[0].mxu0
        %v545 = vadd.f32 %v313, %v544
        %v546 = vpop.f32.mrb[0].mxu0
        %v547 = vadd.f32 %v313, %v546
        %548 = vdwg.mxu0
        %v549 = vmax.f32 %v503, 0.0
        %v550 = vmax.f32 %v505, 0.0
        %v551 = vmax.f32 %v509, 0.0
        %v552 = vmax.f32 %v511, 0.0
        %v553 = vmax.f32 %v515, 0.0
        %v554 = vmax.f32 %v517, 0.0
        %v555 = vmax.f32 %v521, 0.0
        %v556 = vmax.f32 %v523, 0.0
        %v557 = vmax.f32 %v527, 0.0
        %v558 = vmax.f32 %v529, 0.0
        %v559 = vmax.f32 %v533, 0.0
        %v560 = vmax.f32 %v535, 0.0
        %v561 = vmax.f32 %v539, 0.0
        %v562 = vmax.f32 %v541, 0.0
        %v563 = vmax.f32 %v545, 0.0
        %v564 = vmax.f32 %v547, 0.0
        %v565 = vld [vmem:[%s3] sm:$0x1]
        %s566 = sld [smem:[#allocation2]]
        %v567 = vstv %s566
        %vm568 = vcmask 523264
        %v570 = vsel %vm568, %v565, 0
        %572 = vmatprep.subr.mxu0 %v550
        %573 = vmatpush1.msra.mxu0 %v549
        %574 = vmatprep.subr.mxu0 %v552
        %575 = vmatpush1.msra.mxu0 %v551
        %576 = vmatprep.subr.mxu0 %v554
        %577 = vmatpush1.msra.mxu0 %v553
        %578 = vmatprep.subr.mxu0 %v556
        %579 = vmatpush1.msra.mxu0 %v555
        %580 = vmatprep.subr.mxu0 %v558
        %581 = vmatpush1.msra.mxu0 %v557
        %582 = vmatprep.subr.mxu0 %v560
        %583 = vmatpush1.msra.mxu0 %v559
        %584 = vmatprep.subr.mxu0 %v562
        %585 = vmatpush1.msra.mxu0 %v561
        %586 = vmatprep.subr.mxu0 %v564
        %587 = vmatpush1.msra.mxu0 %v563
        %588 = vmatprep.subr.mxu0 0.0
        %589 = vmatpush1.msra.mxu0 0.0
        %590 = vmatprep.subr.mxu0 0.0
        %591 = vmatpush1.msra.mxu0 0.0
        %592 = vmatprep.subr.mxu0 0.0
        %593 = vmatpush1.msra.mxu0 0.0
        %594 = vmatprep.subr.mxu0 0.0
        %595 = vmatpush1.msra.mxu0 0.0
        %596 = vmatprep.subr.mxu0 0.0
        %597 = vmatpush1.msra.mxu0 0.0
        %598 = vmatprep.subr.mxu0 0.0
        %599 = vmatpush1.msra.mxu0 0.0
        %600 = vmatprep.subr.mxu0 0.0
        %601 = vmatpush1.msra.mxu0 0.0
        %602 = vmatprep.subr.mxu0 0.0
        %603 = vmatpush1.msra.mxu0 0.0
        %604 = vmatprep.subr.mxu0 0.0
        %605 = vmatpush1.msra.mxu0 0.0
        %606 = vmatprep.subr.mxu0 0.0
        %607 = vmatpush1.msra.mxu0 0.0
        %608 = vmatprep.subr.mxu0 0.0
        %609 = vmatpush1.msra.mxu0 0.0
        %610 = vmatprep.subr.mxu0 0.0
        %611 = vmatpush1.msra.mxu0 0.0
        %612 = vmatprep.subr.mxu0 0.0
        %613 = vmatpush1.msra.mxu0 0.0
        %614 = vmatprep.subr.mxu0 0.0
        %615 = vmatpush1.msra.mxu0 0.0
        %616 = vmatprep.subr.mxu0 0.0
        %617 = vmatpush1.msra.mxu0 0.0
        %618 = vmatprep.subr.mxu0 0.0
        %619 = vmatpush1.msra.mxu0 0.0
        %620 = vmatprep.subr.mxu0 0.0
        %621 = vmatpush1.msra.mxu0 0.0
        %622 = vmatprep.subr.mxu0 0.0
        %623 = vmatpush1.msra.mxu0 0.0
        %624 = vmatprep.subr.mxu0 0.0
        %625 = vmatpush1.msra.mxu0 0.0
        %626 = vmatprep.subr.mxu0 0.0
        %627 = vmatpush1.msra.mxu0 0.0
        %628 = vmatprep.subr.mxu0 0.0
        %629 = vmatpush1.msra.mxu0 0.0
        %630 = vmatprep.subr.mxu0 0.0
        %631 = vmatpush1.msra.mxu0 0.0
        %632 = vmatprep.subr.mxu0 0.0
        %633 = vmatpush1.msra.mxu0 0.0
        %634 = vmatprep.subr.mxu0 0.0
        %635 = vmatpush1.msra.mxu0 0.0
        %636 = vmatprep.mubr.f32.mxu0 0.0
        %637 = vmatmul.mubr.f32.gmra.mrb[0].mxu0 %v570
        %v638 = vpop.f32.mrb[0].mxu0
        %v639 = vadd.f32 %v567, %v638
        %v640 = vpop.f32.mrb[0].mxu0
        %v641 = vadd.f32 %v567, %v640
        %642 = vdwg.mxu0
        %v645 = vcombine.low %v639, %v641
        %v647 = vunpack.c.l.s4 1966171168
        %v648 = vunpack.c.0.s8 %v647
        %v649 = vlaneseq
        %v650 = vshrl.u32 %v649, 7
        %v651 = vsub.s32 %v648, %v650
        %v652 = vrot.slane %v645, %v651
        %v654 = vunpack.c.l.s4 1966171168
        %v655 = vunpack.c.0.s8 %v654
        %v656 = vlaneseq
        %v657 = vshrl.u32 %v656, 7
        %v658 = vsub.s32 %v655, %v657
        %v659 = vrot.slane %v652, %v658
        %v661 = vlaneseq
        %vm662 = vcmp.ge.s32.totalorder %v661, 0
        %vm663 = vcmp.lt.s32.totalorder %v661, 256
        %vm664 = vmand %vm662, %vm663
        %665 = vst.msk [vmem:[%s219] sm:$0x3] %vm664, %v659
        %s666 = sand.u32 %s138, 1
        %s667 = scalar_lea.sflag [#allocation4], %s666
        %s668 = sand.u32 %s138, 1
        %s669 = smul.addr %s668, 2
        %s670 = scalar_lea.vmem [#allocation3], %s669
        // Predicated region
        $region41: #{tpu_custom_call.1} parent=39 // pred_check
          %p671 = pneg %p148
        $region42: #{tpu_custom_call.1} parent=39 // pred_check_branch
          %673 = sbr.rel (%p671) target = $region44
        $region43: #{tpu_custom_call.1} parent=39 // pred_region
          %s674 = smul.u32 2, %s20
          %s676 = ssub.s32 32, 32
          %677 = vsyncadd %s667, %s676
          %s678 = smul.addr %s674, 16
          %s679 = scalar_lea.hbm %s5, %s678
          %s681 = sshll.u32 %s670, 4
          %s682 = int_to_ptr.vmem [resolvable:$true] %s681
          %684 = dma.vmem_to_hbm [thread:$0]  %s682, 32, %s679, %s667
        $region44: #{tpu_custom_call.1} parent=39 // pred_fallthru
          _
      $region40: #{tpu_custom_call.1} parent=5 // pred_fallthru
        _
      %p685 = scmp.le.s32.totalorder 2, %s15
      // Predicated region
      $region45: #{tpu_custom_call.1} parent=5 // pred_check
        %p686 = pneg %p685
      $region46: #{tpu_custom_call.1} parent=5 // pred_check_branch
        %688 = sbr.rel (%p686) target = $region48
      $region47: #{tpu_custom_call.1} parent=5 // pred_region
        %s689 = ssub.s32 %s15, 2
        // Predicated region
        $region49: #{tpu_custom_call.1} parent=47 // pred_check
          %p690 = pneg %p154
        $region50: #{tpu_custom_call.1} parent=47 // pred_check_branch
          %692 = sbr.rel (%p690) target = $region52
        $region51: #{tpu_custom_call.1} parent=47 // pred_region
          %s693 = sand.u32 %s139, 1
          %s694 = scalar_lea.sflag [#allocation4], %s693
          %s695 = sand.u32 %s139, 1
          %s696 = smul.addr %s695, 2
          %s697 = scalar_lea.vmem [#allocation3], %s696
          %698 = dma.done %s694, 32
        $region52: #{tpu_custom_call.1} parent=47 // pred_fallthru
          _
      $region48: #{tpu_custom_call.1} parent=5 // pred_fallthru
        _
    $region6: #{tpu_custom_call.1} parent=1 // loop_footer
      %s19 = sadd.s32 1, %s15
    $region7: #{tpu_custom_call.1} parent=1 // loop_footer_branch
      %14 = sbr.rel target = $region3
    $region8: #{tpu_custom_call.1} parent=1 // loop_exit
      _
    %699 = vsyncpa [#allocation4], 1
    %s700 = scalar_lea.sflag [#allocation4], 1
    %701 = vsyncpa %s700, 1

</llo_original>
